<compile_context>
chip_gen: v5e
topology: v5e:2x2
jax: 0.10.0
libtpu: 0.0.40
codegen_flags: <defaults>
</compile_context>

<pallas_src>
import jax
import jax.numpy as jnp
from jax.experimental import pallas as pl
from jax.experimental.pallas import tpu as pltpu

INPUT_SIZE = 16
NEG_SLOPE = 0.01   # F.leaky_relu default
FC = 256           # padded feature width for the conv stack (lane dim)
FL = 128           # padded feature width for the linear stack / output (lane dim)


def _lrelu(v):
    return jnp.where(v > 0, v, NEG_SLOPE * v)


def net_kernel(x_ref, t1_ref, wc_ref, wl1_ref, wl23_ref, bc_ref, bl_ref, o_ref):
    """One batch tile: activations are (TB, F) with features on lanes, batch on sublanes."""
    f32 = jnp.float32
    bf16 = jnp.bfloat16

    def pool3(v):
        # MaxPool1d(kernel=3, stride=1) in the flattened (c*L + t) layout:
        # out[:, i] = max(v[:, i], v[:, i+1], v[:, i+2])  (circular; wrap / cross-channel
        # columns are garbage by construction but hit all-zero rows of the next slab).
        n = v.shape[-1]
        s1 = pltpu.roll(v, shift=n - 1, axis=1)   # == roll by -1: s1[:, i] = v[:, i+1]
        s2 = pltpu.roll(v, shift=n - 2, axis=1)   # == roll by -2: s2[:, i] = v[:, i+2]
        return jnp.maximum(jnp.maximum(v, s1), s2)

    x = x_ref[...].astype(bf16)                                             # (TB, 16)

    # conv1 (Toeplitz matmul) + bias + LeakyReLU ; columns laid out as c*14 + t
    y = _lrelu(jnp.dot(x, t1_ref[...], preferred_element_type=f32) + bc_ref[0:1, :])
    y = pool3(y)                                                            # valid: c*14+t, t<12
    # conv2 ; columns c*10 + t
    y = _lrelu(jnp.dot(y.astype(bf16), wc_ref[0], preferred_element_type=f32) + bc_ref[1:2, :])
    y = pool3(y)                                                            # valid: c*10+t, t<8
    # conv3 ; columns c*6 + t  == torch flatten order of (40, 6)
    y = _lrelu(jnp.dot(y.astype(bf16), wc_ref[1], preferred_element_type=f32) + bc_ref[2:3, :])
    # linear1: (TB,256) x (256,128) ; linear2/3: (TB,128) x (128,128)
    y = _lrelu(jnp.dot(y.astype(bf16), wl1_ref[...], preferred_element_type=f32) + bl_ref[0:1, :])
    y = _lrelu(jnp.dot(y.astype(bf16), wl23_ref[0], preferred_element_type=f32) + bl_ref[1:2, :])
    o_ref[...] = jnp.dot(y.astype(bf16), wl23_ref[1], preferred_element_type=f32) + bl_ref[2:3, :]


# ---------------------------------------------------------------------------
# One-time parameter packing (host/plain-JAX glue) — call once, reuse per forward.
# ---------------------------------------------------------------------------
def _pad2(m, rows, cols):
    return jnp.zeros((rows, cols), jnp.float32).at[:m.shape[0], :m.shape[1]].set(
        m.astype(jnp.float32))


def _conv_toeplitz(w, lin, lin_pad):
    """Toeplitz matrix for torch Conv1d (cross-correlation) in batch-major layout.

    Input column index : c_in * lin_pad + i   (only i < lin carries valid data)
    Output column index: c_out * lout + t
    (a @ M)[o*lout + t] = sum_{c,k} a[c*lin_pad + t + k] * w[o, c, k]
    Rows with i >= lin (and rows >= cin*lin_pad) are zero -> they kill the pooled
    garbage columns of the previous layer.
    """
    cout, cin, k = w.shape
    lout = lin - k + 1
    m = jnp.zeros((cin, lin_pad, cout, lout), jnp.float32)
    eye = jnp.eye(lout, dtype=jnp.float32)
    for kk in range(k):
        sel = jnp.zeros((lin_pad, lout), jnp.float32).at[kk:kk + lout, :].set(eye)
        m = m + w[:, :, kk].T[:, None, :, None] * sel[None, :, None, :]
    return m.reshape(cin * lin_pad, cout * lout)


def _bias_layout(b, lout, width):
    v = jnp.repeat(b.astype(jnp.float32), lout)          # index o*lout + t
    return jnp.zeros((width,), jnp.float32).at[:v.shape[0]].set(v)


def prepare_params(params):
    """Pack the 12 small tensors into 7 pre-padded device slabs (bf16 weights, f32 biases)."""
    (w1, b1, w2, b2, w3, b3, W1, bl1, W2, bl2, W3, bl3) = params

    t1 = _pad2(_conv_toeplitz(w1, 16, 16), 16, FC)        # (16, 256)   conv1
    t2 = _pad2(_conv_toeplitz(w2, 12, 14), FC, FC)        # (256, 256)  conv2 (reads pooled layout)
    t3 = _pad2(_conv_toeplitz(w3, 8, 10), FC, FC)         # (256, 256)  conv3
    l1 = _pad2(W1.T, FC, FL)                              # (256, 128)  linear1
    l2 = _pad2(W2.T, FL, FL)                              # (128, 128)  linear2
    l3 = _pad2(W3.T, FL, FL)                              # (128, 128)  linear3 (cols 2.. are zero)

    # Layout invariants the kernel's garbage-column trick relies on.
    assert 10 * 14 <= FC and 20 * 10 <= FC and 40 * 6 <= FC
    assert W1.shape == (120, 240) and W2.shape == (84, 120) and W3.shape == (2, 84)

    packed = dict(
        t1=t1.astype(jnp.bfloat16),
        wc=jnp.stack([t2, t3], axis=0).astype(jnp.bfloat16),        # (2, 256, 256)
        wl1=l1.astype(jnp.bfloat16),                                # (256, 128)
        wl23=jnp.stack([l2, l3], axis=0).astype(jnp.bfloat16),      # (2, 128, 128)
        bc=jnp.stack([_bias_layout(b1, 14, FC),
                      _bias_layout(b2, 10, FC),
                      _bias_layout(b3, 6, FC)], axis=0),            # (3, 256) f32
        bl=jnp.stack([_bias_layout(bl1, 1, FL),
                      _bias_layout(bl2, 1, FL),
                      _bias_layout(bl3, 1, FL)], axis=0),           # (3, 128) f32
    )
    return jax.tree_util.tree_map(jnp.asarray, packed)


def _pick_batch_tile(B):
    if B <= 256:
        return max(8, ((B + 7) // 8) * 8)    # single tile, rounded to 8 sublanes
    if B >= 4096:
        return 1024                          # big tiles, >= 4 grid steps
    if B >= 1024:
        return 512                           # >= 2 grid steps (v7x megacore)
    return 256                               # B in (256, 1024): >= 2 grid steps


def net_forward(x, packed):
    """x: (B, 16) float32 (or anything reshapeable to it) -> logits (B, 2)."""
    x2 = x.reshape(-1, INPUT_SIZE).astype(jnp.float32)
    B = x2.shape[0]

    TB = _pick_batch_tile(B)
    B_pad = -(-B // TB) * TB
    x_pad = jnp.zeros((B_pad, INPUT_SIZE), jnp.float32).at[:B].set(x2)

    out = pl.pallas_call(
        net_kernel,
        out_shape=jax.ShapeDtypeStruct((B_pad, FL), jnp.float32),
        grid_spec=pltpu.PrefetchScalarGridSpec(
            num_scalar_prefetch=0,
            grid=(B_pad // TB,),
            in_specs=[
                pl.BlockSpec((TB, INPUT_SIZE), lambda i: (i, 0)),    # x batch tile
                pl.BlockSpec((16, FC), lambda i: (0, 0)),            # conv1 Toeplitz (bf16)
                pl.BlockSpec((2, FC, FC), lambda i: (0, 0, 0)),      # conv2/conv3 slabs (bf16)
                pl.BlockSpec((FC, FL), lambda i: (0, 0)),            # linear1 slab (bf16)
                pl.BlockSpec((2, FL, FL), lambda i: (0, 0, 0)),      # linear2/3 slabs (bf16)
                pl.BlockSpec((3, FC), lambda i: (0, 0)),             # conv biases (f32)
                pl.BlockSpec((3, FL), lambda i: (0, 0)),             # linear biases (f32)
            ],
            out_specs=pl.BlockSpec((TB, FL), lambda i: (i, 0)),      # lane-dense 128-wide output
        ),
        compiler_params=pltpu.CompilerParams(dimension_semantics=("parallel",)),
    )(x_pad, packed["t1"], packed["wc"], packed["wl1"], packed["wl23"],
      packed["bc"], packed["bl"])

    return out[:B, :2]


# ---------------------------------------------------------------------------
# Pure-JAX reference (mirrors PyTorch semantics) and parameter init
# ---------------------------------------------------------------------------
def reference_forward(x, params):
    (w1, b1, w2, b2, w3, b3, W1, bl1, W2, bl2, W3, bl3) = params
    a = x.reshape(-1, 1, INPUT_SIZE).astype(jnp.float32)
    B = a.shape[0]
    hp = jax.lax.Precision.HIGHEST

    def conv1d(a, w, b):
        k = w.shape[-1]
        Lo = a.shape[-1] - k + 1
        patches = jnp.stack([a[:, :, i:i + Lo] for i in range(k)], axis=-1)  # (B,Cin,Lo,k)
        return jnp.einsum('ock,bclk->bol', w, patches, precision=hp) + b[None, :, None]

    def maxpool3(a):
        Lo = a.shape[-1] - 2
        return jnp.max(jnp.stack([a[:, :, i:i + Lo] for i in range(3)], axis=-1), axis=-1)

    a = maxpool3(_lrelu(conv1d(a, w1, b1)))
    a = maxpool3(_lrelu(conv1d(a, w2, b2)))
    a = _lrelu(conv1d(a, w3, b3))
    a = a.reshape(B, 40 * 6)
    a = _lrelu(jnp.dot(a, W1.T, precision=hp) + bl1)
    a = _lrelu(jnp.dot(a, W2.T, precision=hp) + bl2)
    return jnp.dot(a, W3.T, precision=hp) + bl3


def init_params(key):
    ks = jax.random.split(key, 12)

    def kaiming(k, shape, fan_in):
        return jax.random.normal(k, shape, jnp.float32) * jnp.sqrt(2.0 / fan_in)

    w1 = kaiming(ks[0], (10, 1, 3), 3)
    b1 = 0.1 * jax.random.normal(ks[1], (10,), jnp.float32)
    w2 = kaiming(ks[2], (20, 10, 3), 30)
    b2 = 0.1 * jax.random.normal(ks[3], (20,), jnp.float32)
    w3 = kaiming(ks[4], (40, 20, 3), 60)
    b3 = 0.1 * jax.random.normal(ks[5], (40,), jnp.float32)
    W1 = kaiming(ks[6], (120, 240), 240)
    bl1 = 0.1 * jax.random.normal(ks[7], (120,), jnp.float32)
    W2 = kaiming(ks[8], (84, 120), 120)
    bl2 = 0.1 * jax.random.normal(ks[9], (84,), jnp.float32)
    W3 = kaiming(ks[10], (2, 84), 84)
    bl3 = 0.1 * jax.random.normal(ks[11], (2,), jnp.float32)
    return (w1, b1, w2, b2, w3, b3, W1, bl1, W2, bl2, W3, bl3)


if __name__ == "__main__":
    key = jax.random.PRNGKey(0)
    pkey, xkey = jax.random.split(key)
    params = init_params(pkey)
    packed = prepare_params(params)          # one-time slab packing (device-resident)

    B = 4
    x = jax.random.normal(xkey, (B, INPUT_SIZE), jnp.float32)

    out = jax.block_until_ready(net_forward(x, packed))
    ref = reference_forward(x, params)

    assert out.shape == (B, 2), out.shape
    assert jnp.allclose(out, ref, rtol=5e-2, atol=5e-2), (out, ref)

    print("KERNEL_OK")
</pallas_src>

<mosaic_0001>
module attributes {stable_mosaic.version = 11 : i64} {
  func.func @net_kernel(%arg0: i32, %arg1: memref<8x16xf32, #tpu.memory_space<vmem>>, %arg2: memref<16x256xbf16, #tpu.memory_space<vmem>>, %arg3: memref<2x256x256xbf16, #tpu.memory_space<vmem>>, %arg4: memref<256x128xbf16, #tpu.memory_space<vmem>>, %arg5: memref<2x128x128xbf16, #tpu.memory_space<vmem>>, %arg6: memref<3x256xf32, #tpu.memory_space<vmem>>, %arg7: memref<3x128xf32, #tpu.memory_space<vmem>>, %arg8: memref<8x128xf32, #tpu.memory_space<vmem>>) attributes {dimension_semantics = [#tpu.dimension_semantics<parallel>], iteration_bounds = array<i64: 1>, scalar_prefetch = 0 : i64, scratch_operands = 0 : i64, tpu.core_type = #tpu.core_type<tc>, window_params = [{transform_indices = @transform_0, window_bounds = array<i64: 8, 16>}, {pipeline_mode = #tpu.pipeline_mode<synchronous>, transform_indices = @transform_1, window_bounds = array<i64: 16, 256>}, {pipeline_mode = #tpu.pipeline_mode<synchronous>, transform_indices = @transform_2, window_bounds = array<i64: 2, 256, 256>}, {pipeline_mode = #tpu.pipeline_mode<synchronous>, transform_indices = @transform_3, window_bounds = array<i64: 256, 128>}, {pipeline_mode = #tpu.pipeline_mode<synchronous>, transform_indices = @transform_4, window_bounds = array<i64: 2, 128, 128>}, {pipeline_mode = #tpu.pipeline_mode<synchronous>, transform_indices = @transform_5, window_bounds = array<i64: 3, 256>}, {pipeline_mode = #tpu.pipeline_mode<synchronous>, transform_indices = @transform_6, window_bounds = array<i64: 3, 128>}, {transform_indices = @transform_7, window_bounds = array<i64: 8, 128>}]} {
    %c0 = arith.constant 0 : index
    %c0_0 = arith.constant 0 : index
    %0 = vector.load %arg1[%c0, %c0_0] : memref<8x16xf32, #tpu.memory_space<vmem>>, vector<8x16xf32>
    %1 = arith.truncf %0 : vector<8x16xf32> to vector<8x16xbf16>
    %c0_1 = arith.constant 0 : index
    %c0_2 = arith.constant 0 : index
    %2 = vector.load %arg2[%c0_1, %c0_2] : memref<16x256xbf16, #tpu.memory_space<vmem>>, vector<16x256xbf16>
    %cst = arith.constant dense<0.000000e+00> : vector<8x256xf32>
    %3 = tpu.matmul %1, %2, %cst {dimension_numbers = #tpu.dot_dimension_numbers<[1], [0], [0], [1], [0, 0, 1, 1], [], []>} : vector<8x16xbf16>, vector<16x256xbf16>, vector<8x256xf32> -> vector<8x256xf32>
    %c0_3 = arith.constant 0 : index
    %c0_4 = arith.constant 0 : index
    %4 = vector.load %arg6[%c0_3, %c0_4] : memref<3x256xf32, #tpu.memory_space<vmem>>, vector<1x256xf32>
    %5 = vector.broadcast %4 : vector<1x256xf32> to vector<8x256xf32>
    %6 = arith.addf %3, %5 : vector<8x256xf32>
    %cst_5 = arith.constant 0.000000e+00 : f32
    %7 = vector.broadcast %cst_5 : f32 to vector<8x256xf32>
    %8 = arith.cmpf ogt, %6, %7 : vector<8x256xf32>
    %cst_6 = arith.constant 0.00999999977 : f32
    %9 = vector.broadcast %cst_6 : f32 to vector<8x256xf32>
    %10 = arith.mulf %9, %6 : vector<8x256xf32>
    %11 = arith.select %8, %6, %10 : vector<8x256xi1>, vector<8x256xf32>
    %c255_i32 = arith.constant 255 : i32
    %12 = tpu.dynamic_rotate %11 by %c255_i32 dim 1 : vector<8x256xf32>, i32 -> vector<8x256xf32>
    %c254_i32 = arith.constant 254 : i32
    %13 = tpu.dynamic_rotate %11 by %c254_i32 dim 1 : vector<8x256xf32>, i32 -> vector<8x256xf32>
    %14 = arith.maximumf %11, %12 : vector<8x256xf32>
    %15 = arith.maximumf %14, %13 : vector<8x256xf32>
    %16 = arith.truncf %15 : vector<8x256xf32> to vector<8x256xbf16>
    %c0_7 = arith.constant 0 : index
    %c0_8 = arith.constant 0 : index
    %c0_9 = arith.constant 0 : index
    %17 = vector.load %arg3[%c0_7, %c0_8, %c0_9] : memref<2x256x256xbf16, #tpu.memory_space<vmem>>, vector<1x256x256xbf16>
    %18 = vector.shape_cast %17 : vector<1x256x256xbf16> to vector<256x256xbf16>
    %cst_10 = arith.constant dense<0.000000e+00> : vector<8x256xf32>
    %19 = tpu.matmul %16, %18, %cst_10 {dimension_numbers = #tpu.dot_dimension_numbers<[1], [0], [0], [1], [0, 0, 1, 1], [], []>} : vector<8x256xbf16>, vector<256x256xbf16>, vector<8x256xf32> -> vector<8x256xf32>
    %c1 = arith.constant 1 : index
    %c0_11 = arith.constant 0 : index
    %20 = vector.load %arg6[%c1, %c0_11] : memref<3x256xf32, #tpu.memory_space<vmem>>, vector<1x256xf32>
    %21 = vector.broadcast %20 : vector<1x256xf32> to vector<8x256xf32>
    %22 = arith.addf %19, %21 : vector<8x256xf32>
    %cst_12 = arith.constant 0.000000e+00 : f32
    %23 = vector.broadcast %cst_12 : f32 to vector<8x256xf32>
    %24 = arith.cmpf ogt, %22, %23 : vector<8x256xf32>
    %cst_13 = arith.constant 0.00999999977 : f32
    %25 = vector.broadcast %cst_13 : f32 to vector<8x256xf32>
    %26 = arith.mulf %25, %22 : vector<8x256xf32>
    %27 = arith.select %24, %22, %26 : vector<8x256xi1>, vector<8x256xf32>
    %c255_i32_14 = arith.constant 255 : i32
    %28 = tpu.dynamic_rotate %27 by %c255_i32_14 dim 1 : vector<8x256xf32>, i32 -> vector<8x256xf32>
    %c254_i32_15 = arith.constant 254 : i32
    %29 = tpu.dynamic_rotate %27 by %c254_i32_15 dim 1 : vector<8x256xf32>, i32 -> vector<8x256xf32>
    %30 = arith.maximumf %27, %28 : vector<8x256xf32>
    %31 = arith.maximumf %30, %29 : vector<8x256xf32>
    %32 = arith.truncf %31 : vector<8x256xf32> to vector<8x256xbf16>
    %c1_16 = arith.constant 1 : index
    %c0_17 = arith.constant 0 : index
    %c0_18 = arith.constant 0 : index
    %33 = vector.load %arg3[%c1_16, %c0_17, %c0_18] : memref<2x256x256xbf16, #tpu.memory_space<vmem>>, vector<1x256x256xbf16>
    %34 = vector.shape_cast %33 : vector<1x256x256xbf16> to vector<256x256xbf16>
    %cst_19 = arith.constant dense<0.000000e+00> : vector<8x256xf32>
    %35 = tpu.matmul %32, %34, %cst_19 {dimension_numbers = #tpu.dot_dimension_numbers<[1], [0], [0], [1], [0, 0, 1, 1], [], []>} : vector<8x256xbf16>, vector<256x256xbf16>, vector<8x256xf32> -> vector<8x256xf32>
    %c2 = arith.constant 2 : index
    %c0_20 = arith.constant 0 : index
    %36 = vector.load %arg6[%c2, %c0_20] : memref<3x256xf32, #tpu.memory_space<vmem>>, vector<1x256xf32>
    %37 = vector.broadcast %36 : vector<1x256xf32> to vector<8x256xf32>
    %38 = arith.addf %35, %37 : vector<8x256xf32>
    %cst_21 = arith.constant 0.000000e+00 : f32
    %39 = vector.broadcast %cst_21 : f32 to vector<8x256xf32>
    %40 = arith.cmpf ogt, %38, %39 : vector<8x256xf32>
    %cst_22 = arith.constant 0.00999999977 : f32
    %41 = vector.broadcast %cst_22 : f32 to vector<8x256xf32>
    %42 = arith.mulf %41, %38 : vector<8x256xf32>
    %43 = arith.select %40, %38, %42 : vector<8x256xi1>, vector<8x256xf32>
    %44 = arith.truncf %43 : vector<8x256xf32> to vector<8x256xbf16>
    %c0_23 = arith.constant 0 : index
    %c0_24 = arith.constant 0 : index
    %45 = vector.load %arg4[%c0_23, %c0_24] : memref<256x128xbf16, #tpu.memory_space<vmem>>, vector<256x128xbf16>
    %cst_25 = arith.constant dense<0.000000e+00> : vector<8x128xf32>
    %46 = tpu.matmul %44, %45, %cst_25 {dimension_numbers = #tpu.dot_dimension_numbers<[1], [0], [0], [1], [0, 0, 1, 1], [], []>} : vector<8x256xbf16>, vector<256x128xbf16>, vector<8x128xf32> -> vector<8x128xf32>
    %c0_26 = arith.constant 0 : index
    %c0_27 = arith.constant 0 : index
    %47 = vector.load %arg7[%c0_26, %c0_27] : memref<3x128xf32, #tpu.memory_space<vmem>>, vector<1x128xf32>
    %48 = vector.broadcast %47 : vector<1x128xf32> to vector<8x128xf32>
    %49 = arith.addf %46, %48 : vector<8x128xf32>
    %cst_28 = arith.constant 0.000000e+00 : f32
    %50 = vector.broadcast %cst_28 : f32 to vector<8x128xf32>
    %51 = arith.cmpf ogt, %49, %50 : vector<8x128xf32>
    %cst_29 = arith.constant 0.00999999977 : f32
    %52 = vector.broadcast %cst_29 : f32 to vector<8x128xf32>
    %53 = arith.mulf %52, %49 : vector<8x128xf32>
    %54 = arith.select %51, %49, %53 : vector<8x128xi1>, vector<8x128xf32>
    %55 = arith.truncf %54 : vector<8x128xf32> to vector<8x128xbf16>
    %c0_30 = arith.constant 0 : index
    %c0_31 = arith.constant 0 : index
    %c0_32 = arith.constant 0 : index
    %56 = vector.load %arg5[%c0_30, %c0_31, %c0_32] : memref<2x128x128xbf16, #tpu.memory_space<vmem>>, vector<1x128x128xbf16>
    %57 = vector.shape_cast %56 : vector<1x128x128xbf16> to vector<128x128xbf16>
    %cst_33 = arith.constant dense<0.000000e+00> : vector<8x128xf32>
    %58 = tpu.matmul %55, %57, %cst_33 {dimension_numbers = #tpu.dot_dimension_numbers<[1], [0], [0], [1], [0, 0, 1, 1], [], []>} : vector<8x128xbf16>, vector<128x128xbf16>, vector<8x128xf32> -> vector<8x128xf32>
    %c1_34 = arith.constant 1 : index
    %c0_35 = arith.constant 0 : index
    %59 = vector.load %arg7[%c1_34, %c0_35] : memref<3x128xf32, #tpu.memory_space<vmem>>, vector<1x128xf32>
    %60 = vector.broadcast %59 : vector<1x128xf32> to vector<8x128xf32>
    %61 = arith.addf %58, %60 : vector<8x128xf32>
    %cst_36 = arith.constant 0.000000e+00 : f32
    %62 = vector.broadcast %cst_36 : f32 to vector<8x128xf32>
    %63 = arith.cmpf ogt, %61, %62 : vector<8x128xf32>
    %cst_37 = arith.constant 0.00999999977 : f32
    %64 = vector.broadcast %cst_37 : f32 to vector<8x128xf32>
    %65 = arith.mulf %64, %61 : vector<8x128xf32>
    %66 = arith.select %63, %61, %65 : vector<8x128xi1>, vector<8x128xf32>
    %67 = arith.truncf %66 : vector<8x128xf32> to vector<8x128xbf16>
    %c1_38 = arith.constant 1 : index
    %c0_39 = arith.constant 0 : index
    %c0_40 = arith.constant 0 : index
    %68 = vector.load %arg5[%c1_38, %c0_39, %c0_40] : memref<2x128x128xbf16, #tpu.memory_space<vmem>>, vector<1x128x128xbf16>
    %69 = vector.shape_cast %68 : vector<1x128x128xbf16> to vector<128x128xbf16>
    %cst_41 = arith.constant dense<0.000000e+00> : vector<8x128xf32>
    %70 = tpu.matmul %67, %69, %cst_41 {dimension_numbers = #tpu.dot_dimension_numbers<[1], [0], [0], [1], [0, 0, 1, 1], [], []>} : vector<8x128xbf16>, vector<128x128xbf16>, vector<8x128xf32> -> vector<8x128xf32>
    %c2_42 = arith.constant 2 : index
    %c0_43 = arith.constant 0 : index
    %71 = vector.load %arg7[%c2_42, %c0_43] : memref<3x128xf32, #tpu.memory_space<vmem>>, vector<1x128xf32>
    %72 = vector.broadcast %71 : vector<1x128xf32> to vector<8x128xf32>
    %73 = arith.addf %70, %72 : vector<8x128xf32>
    %c0_44 = arith.constant 0 : index
    %c0_45 = arith.constant 0 : index
    %74 = vector.load %arg8[%c0_44, %c0_45] : memref<8x128xf32, #tpu.memory_space<vmem>>, vector<8x128xf32>
    tpu.vector_store %arg8[%c0_44, %c0_45], %73 {strides = array<i32>} : memref<8x128xf32, #tpu.memory_space<vmem>>, vector<8x128xf32>,
    return
  }
  func.func @transform_0(%arg0: i32) -> (i32, i32) {
    %c0_i32 = arith.constant 0 : i32
    %c0_i32_0 = arith.constant 0 : i32
    return %arg0, %c0_i32 : i32, i32
  }
  func.func @transform_1(%arg0: i32) -> (i32, i32) {
    %c0_i32 = arith.constant 0 : i32
    %c0_i32_0 = arith.constant 0 : i32
    %c0_i32_1 = arith.constant 0 : i32
    return %c0_i32, %c0_i32_0 : i32, i32
  }
  func.func @transform_2(%arg0: i32) -> (i32, i32, i32) {
    %c0_i32 = arith.constant 0 : i32
    %c0_i32_0 = arith.constant 0 : i32
    %c0_i32_1 = arith.constant 0 : i32
    %c0_i32_2 = arith.constant 0 : i32
    return %c0_i32, %c0_i32_0, %c0_i32_1 : i32, i32, i32
  }
  func.func @transform_3(%arg0: i32) -> (i32, i32) {
    %c0_i32 = arith.constant 0 : i32
    %c0_i32_0 = arith.constant 0 : i32
    %c0_i32_1 = arith.constant 0 : i32
    return %c0_i32, %c0_i32_0 : i32, i32
  }
  func.func @transform_4(%arg0: i32) -> (i32, i32, i32) {
    %c0_i32 = arith.constant 0 : i32
    %c0_i32_0 = arith.constant 0 : i32
    %c0_i32_1 = arith.constant 0 : i32
    %c0_i32_2 = arith.constant 0 : i32
    return %c0_i32, %c0_i32_0, %c0_i32_1 : i32, i32, i32
  }
  func.func @transform_5(%arg0: i32) -> (i32, i32) {
    %c0_i32 = arith.constant 0 : i32
    %c0_i32_0 = arith.constant 0 : i32
    %c0_i32_1 = arith.constant 0 : i32
    return %c0_i32, %c0_i32_0 : i32, i32
  }
  func.func @transform_6(%arg0: i32) -> (i32, i32) {
    %c0_i32 = arith.constant 0 : i32
    %c0_i32_0 = arith.constant 0 : i32
    %c0_i32_1 = arith.constant 0 : i32
    return %c0_i32, %c0_i32_0 : i32, i32
  }
  func.func @transform_7(%arg0: i32) -> (i32, i32) {
    %c0_i32 = arith.constant 0 : i32
    %c0_i32_0 = arith.constant 0 : i32
    return %arg0, %c0_i32 : i32, i32
  }
}

</mosaic_0001>

<llo_original>
// kernel: tpu_custom_call.1
$region0: #{tpu_custom_call.1}
  #allocation0 [shape = 'u32[]', space=smem, size = 0x4, offset = 0x4, fixed_abs, tag = 'smem constant byte address 0x4 - core index']
  #allocation1 [shape = 'u32[72,128]{1,0:T(1,128)}', space=vmem, size = 0x9000, scoped, tag = 'internal scratch']
  %s0 = inlined_call_operand.hbm [shape: f32[8,16], index: 0, kind: input, shape index: {}]
  %s1 = inlined_call_operand.hbm [shape: bf16[16,256], index: 1, kind: input, shape index: {}]
  %s2 = inlined_call_operand.hbm [shape: bf16[2,256,256], index: 2, kind: input, shape index: {}]
  %s3 = inlined_call_operand.hbm [shape: bf16[256,128], index: 3, kind: input, shape index: {}]
  %s4 = inlined_call_operand.hbm [shape: bf16[2,128,128], index: 4, kind: input, shape index: {}]
  %s5 = inlined_call_operand.hbm [shape: f32[3,256], index: 5, kind: input, shape index: {}]
  %s6 = inlined_call_operand.vmem [shape: f32[3,128], index: 6, kind: input, shape index: {}]
  %s7 = inlined_call_operand.hbm [shape: f32[8,128], index: 7, kind: output, shape index: {}]
  %s8 = sld [smem:[#allocation0]]
  $region62: #{tpu_custom_call.1} parent=0
    _
  %s10 = ssub.s32 1, %s8
  %s11 = scalar_select 0, %s10, %s8
  $region1: #{tpu_custom_call.1} parent=0
    #allocation2 [shape = 'u8[4096]{0}', space=vmem, size = 0x1000, scoped, tag = 'input window, operand 0, single buffered']
    #allocation3 [shape = 's32[1]{0}', space=sflag, size = 0x4, scoped, tag = 'scoped memory for tpu_custom_call.1']
    #allocation4 [shape = 's32[1]{0}', space=sflag, size = 0x4, scoped, tag = 'scoped memory for tpu_custom_call.1']
    #allocation5 [shape = 'u8[8192]{0}', space=vmem, size = 0x2000, scoped, tag = 'input window, operand 1, single buffered']
    #allocation6 [shape = 's32[1]{0}', space=sflag, size = 0x4, scoped, tag = 'scoped memory for tpu_custom_call.1']
    #allocation7 [shape = 'u8[262144]{0}', space=vmem, size = 0x40000, scoped, tag = 'input window, operand 2, single buffered']
    #allocation8 [shape = 'u8[65536]{0}', space=vmem, size = 0x10000, scoped, tag = 'input window, operand 3, single buffered']
    #allocation9 [shape = 's32[1]{0}', space=sflag, size = 0x4, scoped, tag = 'scoped memory for tpu_custom_call.1']
    #allocation10 [shape = 'u8[65536]{0}', space=vmem, size = 0x10000, scoped, tag = 'input window, operand 4, single buffered']
    #allocation11 [shape = 'u8[4096]{0}', space=vmem, size = 0x1000, scoped, tag = 'input window, operand 5, single buffered']
    #allocation12 [shape = 's32[1]{0}', space=sflag, size = 0x4, scoped, tag = 'scoped memory for tpu_custom_call.1']
    #allocation13 [shape = 'u8[4096]{0}', space=vmem, size = 0x1000, scoped, tag = 'output window, operand 0, single buffered']
    %12 = vsyncpa [#allocation3], 0
    %13 = vsyncpa [#allocation6], 0
    %14 = vsyncpa [#allocation9], 0
    %15 = vsyncpa [#allocation12], 0
    %16 = vsyncpa [#allocation4], 0
    // Predicated region
    $region2: #{tpu_custom_call.1} parent=1 // pred_check
      _
    $region3: #{tpu_custom_call.1} parent=1 // pred_check_branch
      %18 = sbr.rel (0) target = $region5
    $region4: #{tpu_custom_call.1} parent=1 // pred_region
      %20 = vsyncadd [#allocation3], 0
      %s22 = sshll.u32 %s0, 4
      %s23 = int_to_ptr.hbm [resolvable:$true] %s22
      %s24 = sshll.u32 [#allocation2], 4
      %s25 = int_to_ptr.vmem [resolvable:$true] %s24
      %27 = dma.hbm_to_vmem [thread:$0]  %s23, 128, %s25, [#allocation3]
    $region5: #{tpu_custom_call.1} parent=1 // pred_fallthru
      _
    // Predicated region
    $region6: #{tpu_custom_call.1} parent=1 // pred_check
      _
    $region7: #{tpu_custom_call.1} parent=1 // pred_check_branch
      %29 = sbr.rel (0) target = $region9
    $region8: #{tpu_custom_call.1} parent=1 // pred_region
      %31 = vsyncadd [#allocation6], 0
      %s32 = sshll.u32 %s1, 4
      %s33 = int_to_ptr.hbm [resolvable:$true] %s32
      %s34 = sshll.u32 [#allocation5], 4
      %s35 = int_to_ptr.vmem [resolvable:$true] %s34
      %40 = dma.hbm_to_vmem [thread:$0]  %s33, 256, %s35, [#allocation6], 128, 128, 8
    $region9: #{tpu_custom_call.1} parent=1 // pred_fallthru
      _
    // Predicated region
    $region10: #{tpu_custom_call.1} parent=1 // pred_check
      _
    $region11: #{tpu_custom_call.1} parent=1 // pred_check_branch
      %42 = sbr.rel (0) target = $region13
    $region12: #{tpu_custom_call.1} parent=1 // pred_region
      %44 = vsyncadd [#allocation6], 0
      %s45 = sshll.u32 %s2, 4
      %s46 = int_to_ptr.hbm [resolvable:$true] %s45
      %s47 = sshll.u32 [#allocation7], 4
      %s48 = int_to_ptr.vmem [resolvable:$true] %s47
      %53 = dma.hbm_to_vmem [thread:$0]  %s46, 8192, %s48, [#allocation6], 128, 128, 8
    $region13: #{tpu_custom_call.1} parent=1 // pred_fallthru
      _
    // Predicated region
    $region14: #{tpu_custom_call.1} parent=1 // pred_check
      _
    $region15: #{tpu_custom_call.1} parent=1 // pred_check_branch
      %55 = sbr.rel (0) target = $region17
    $region16: #{tpu_custom_call.1} parent=1 // pred_region
      %57 = vsyncadd [#allocation9], 0
      %s58 = sshll.u32 %s3, 4
      %s59 = int_to_ptr.hbm [resolvable:$true] %s58
      %s60 = sshll.u32 [#allocation8], 4
      %s61 = int_to_ptr.vmem [resolvable:$true] %s60
      %66 = dma.hbm_to_vmem [thread:$0]  %s59, 2048, %s61, [#allocation9], 64, 64, 4
    $region17: #{tpu_custom_call.1} parent=1 // pred_fallthru
      _
    // Predicated region
    $region18: #{tpu_custom_call.1} parent=1 // pred_check
      _
    $region19: #{tpu_custom_call.1} parent=1 // pred_check_branch
      %68 = sbr.rel (0) target = $region21
    $region20: #{tpu_custom_call.1} parent=1 // pred_region
      %70 = vsyncadd [#allocation9], 0
      %s71 = sshll.u32 %s4, 4
      %s72 = int_to_ptr.hbm [resolvable:$true] %s71
      %s73 = sshll.u32 [#allocation10], 4
      %s74 = int_to_ptr.vmem [resolvable:$true] %s73
      %79 = dma.hbm_to_vmem [thread:$0]  %s72, 2048, %s74, [#allocation9], 64, 64, 4
    $region21: #{tpu_custom_call.1} parent=1 // pred_fallthru
      _
    // Predicated region
    $region22: #{tpu_custom_call.1} parent=1 // pred_check
      _
    $region23: #{tpu_custom_call.1} parent=1 // pred_check_branch
      %81 = sbr.rel (0) target = $region25
    $region24: #{tpu_custom_call.1} parent=1 // pred_region
      %83 = vsyncadd [#allocation12], 0
      %s85 = sshll.u32 %s5, 4
      %s86 = int_to_ptr.hbm [resolvable:$true] %s85
      %s87 = sshll.u32 [#allocation11], 4
      %s88 = int_to_ptr.vmem [resolvable:$true] %s87
      %90 = dma.hbm_to_vmem [thread:$0]  %s86, 128, %s88, [#allocation12]
    $region25: #{tpu_custom_call.1} parent=1 // pred_fallthru
      _
    // Predicated region
    $region26: #{tpu_custom_call.1} parent=1 // pred_check
      _
    $region27: #{tpu_custom_call.1} parent=1 // pred_check_branch
      %92 = sbr.rel (0) target = $region29
    $region28: #{tpu_custom_call.1} parent=1 // pred_region
      _
    $region29: #{tpu_custom_call.1} parent=1 // pred_fallthru
      _
    // Predicated region
    $region30: #{tpu_custom_call.1} parent=1 // pred_check
      _
    $region31: #{tpu_custom_call.1} parent=1 // pred_check_branch
      %94 = sbr.rel (0) target = $region33
    $region32: #{tpu_custom_call.1} parent=1 // pred_region
      %96 = dma.done [#allocation3], 128
    $region33: #{tpu_custom_call.1} parent=1 // pred_fallthru
      _
    // Predicated region
    $region34: #{tpu_custom_call.1} parent=1 // pred_check
      _
    $region35: #{tpu_custom_call.1} parent=1 // pred_check_branch
      %98 = sbr.rel (0) target = $region37
    $region36: #{tpu_custom_call.1} parent=1 // pred_region
      %100 = dma.done [#allocation6], 256
    $region37: #{tpu_custom_call.1} parent=1 // pred_fallthru
      _
    // Predicated region
    $region38: #{tpu_custom_call.1} parent=1 // pred_check
      _
    $region39: #{tpu_custom_call.1} parent=1 // pred_check_branch
      %102 = sbr.rel (0) target = $region41
    $region40: #{tpu_custom_call.1} parent=1 // pred_region
      %104 = dma.done [#allocation6], 8192
    $region41: #{tpu_custom_call.1} parent=1 // pred_fallthru
      _
    // Predicated region
    $region42: #{tpu_custom_call.1} parent=1 // pred_check
      _
    $region43: #{tpu_custom_call.1} parent=1 // pred_check_branch
      %106 = sbr.rel (0) target = $region45
    $region44: #{tpu_custom_call.1} parent=1 // pred_region
      %108 = dma.done [#allocation9], 2048
    $region45: #{tpu_custom_call.1} parent=1 // pred_fallthru
      _
    // Predicated region
    $region46: #{tpu_custom_call.1} parent=1 // pred_check
      _
    $region47: #{tpu_custom_call.1} parent=1 // pred_check_branch
      %110 = sbr.rel (0) target = $region49
    $region48: #{tpu_custom_call.1} parent=1 // pred_region
      %112 = dma.done [#allocation9], 2048
    $region49: #{tpu_custom_call.1} parent=1 // pred_fallthru
      _
    // Predicated region
    $region50: #{tpu_custom_call.1} parent=1 // pred_check
      _
    $region51: #{tpu_custom_call.1} parent=1 // pred_check_branch
      %114 = sbr.rel (0) target = $region53
    $region52: #{tpu_custom_call.1} parent=1 // pred_region
      %116 = dma.done [#allocation12], 128
    $region53: #{tpu_custom_call.1} parent=1 // pred_fallthru
      _
    %v118 = vld [vmem:[#allocation2] sm:$0xff]
    %v119 = vpack.c.bf16 %v118, %v118
    %v120 = vld [vmem:[#allocation5] sm:$0xff]
    %v121 = vld [vmem:[#allocation5 + $0x8] sm:$0xff]
    %v122 = vld [vmem:[#allocation11] ss:$4 sm:$0x3]
    %v124 = vperm.slane %v122, 0
    %v125 = vperm.slane %v122, 1
    %v130 = vunpack.c.l.b16 %v120
    %v131 = vunpack.c.h.b16 %v120
    %v132 = vunpack.c.l.b16 %v121
    %v133 = vunpack.c.h.b16 %v121
    %v134 = vpack.c.b16 %v132, %v130
    %v135 = vpack.c.b16 %v133, %v131
    %vm138 = vcmask 130048
    %v140 = vsel %vm138, %v119, 0
    %142 = vmatpush.bf16.msra.mxu0 0
    %143 = vmatpush.bf16.msra.mxu0 0
    %144 = vmatpush.bf16.msra.mxu0 0
    %145 = vmatpush.bf16.msra.mxu0 0
    %146 = vmatpush.bf16.msra.mxu0 0
    %147 = vmatpush.bf16.msra.mxu0 0
    %148 = vmatpush.bf16.msra.mxu0 0
    %149 = vmatpush.bf16.msra.mxu0 %v134
    %150 = vmatmul.bf16.gmra.mxu0 %v140
    %v151 = vpop.f32.mrf.mxu0
    %v152 = vadd.f32 %v124, %v151
    %v153 = vpop.f32.mrf.mxu0
    %154 = vdwg.mxu0
    %155 = vmatpush.bf16.msra.mxu0 0
    %156 = vmatpush.bf16.msra.mxu0 0
    %157 = vmatpush.bf16.msra.mxu0 0
    %158 = vmatpush.bf16.msra.mxu0 0
    %159 = vmatpush.bf16.msra.mxu0 0
    %160 = vmatpush.bf16.msra.mxu0 0
    %161 = vmatpush.bf16.msra.mxu0 0
    %162 = vmatpush.bf16.msra.mxu0 %v135
    %163 = vmatmul.bf16.gmra.mxu0 %v140
    %v164 = vpop.f32.mrf.mxu0
    %v165 = vadd.f32 %v125, %v164
    %v166 = vpop.f32.mrf.mxu0
    %167 = vdwg.mxu0
    %vm168 = vcmp.gt.f32.partialorder %v152, 0.0
    %vm169 = vcmp.gt.f32.partialorder %v165, 0.0
    %v170 = vmul.f32 %v152, 0.01
    %v171 = vmul.f32 %v165, 0.01
    %v172 = vsel %vm168, %v152, %v170
    %v173 = vsel %vm169, %v165, %v171
    %174 = vrot.lane.b32.xlu0 %v172, 127
    %v175 = vpop.permute.xlu0 %174
    %176 = vrot.lane.b32.xlu0 %v173, 127
    %v177 = vpop.permute.xlu0 %176
    %v178 = vlaneseq
    %v179 = vand.u32 %v178, 127
    %vm180 = vcmp.lt.s32.totalorder %v179, 127
    %v181 = vsel %vm180, %v175, %v177
    %v182 = vsel %vm180, %v177, %v175
    %183 = vrot.lane.b32.xlu0 %v172, 126
    %v184 = vpop.permute.xlu0 %183
    %185 = vrot.lane.b32.xlu0 %v173, 126
    %v186 = vpop.permute.xlu0 %185
    %vm187 = vcmp.lt.s32.totalorder %v179, 126
    %v188 = vsel %vm187, %v184, %v186
    %v189 = vsel %vm187, %v186, %v184
    %v190 = vmax.f32 %v172, %v181
    %v191 = vmax.f32 %v173, %v182
    %v192 = vmax.f32 %v190, %v188
    %v193 = vmax.f32 %v191, %v189
    %v194 = vpack.c.bf16 %v192, %v192
    %v195 = vpack.c.bf16 %v193, %v193
    %v196 = vld [vmem:[#allocation7] sm:$0xff]
    %v197 = vld [vmem:[#allocation7 + $0x8] sm:$0xff]
    %v198 = vld [vmem:[#allocation7 + $0x10] sm:$0xff]
    %v199 = vld [vmem:[#allocation7 + $0x18] sm:$0xff]
    %v200 = vld [vmem:[#allocation7 + $0x20] sm:$0xff]
    %v201 = vld [vmem:[#allocation7 + $0x28] sm:$0xff]
    %v202 = vld [vmem:[#allocation7 + $0x30] sm:$0xff]
    %v203 = vld [vmem:[#allocation7 + $0x38] sm:$0xff]
    %v204 = vld [vmem:[#allocation7 + $0x40] sm:$0xff]
    %v205 = vld [vmem:[#allocation7 + $0x48] sm:$0xff]
    %v206 = vld [vmem:[#allocation7 + $0x50] sm:$0xff]
    %v207 = vld [vmem:[#allocation7 + $0x58] sm:$0xff]
    %v208 = vld [vmem:[#allocation7 + $0x60] sm:$0xff]
    %v209 = vld [vmem:[#allocation7 + $0x68] sm:$0xff]
    %v210 = vld [vmem:[#allocation7 + $0x70] sm:$0xff]
    %v211 = vld [vmem:[#allocation7 + $0x78] sm:$0xff]
    %v212 = vld [vmem:[#allocation7 + $0x80] sm:$0xff]
    %v213 = vld [vmem:[#allocation7 + $0x88] sm:$0xff]
    %v214 = vld [vmem:[#allocation7 + $0x90] sm:$0xff]
    %v215 = vld [vmem:[#allocation7 + $0x98] sm:$0xff]
    %v216 = vld [vmem:[#allocation7 + $0xa0] sm:$0xff]
    %v217 = vld [vmem:[#allocation7 + $0xa8] sm:$0xff]
    %v218 = vld [vmem:[#allocation7 + $0xb0] sm:$0xff]
    %v219 = vld [vmem:[#allocation7 + $0xb8] sm:$0xff]
    %v220 = vld [vmem:[#allocation7 + $0xc0] sm:$0xff]
    %v221 = vld [vmem:[#allocation7 + $0xc8] sm:$0xff]
    %v222 = vld [vmem:[#allocation7 + $0xd0] sm:$0xff]
    %v223 = vld [vmem:[#allocation7 + $0xd8] sm:$0xff]
    %v224 = vld [vmem:[#allocation7 + $0xe0] sm:$0xff]
    %v225 = vld [vmem:[#allocation7 + $0xe8] sm:$0xff]
    %v226 = vld [vmem:[#allocation7 + $0xf0] sm:$0xff]
    %v227 = vld [vmem:[#allocation7 + $0xf8] sm:$0xff]
    %s228 = scalar_lea.vmem [#allocation11], 1
    %v229 = vld [vmem:[%s228] ss:$4 sm:$0x3]
    %v231 = vperm.slane %v229, 0
    %v232 = vperm.slane %v229, 1
    %v267 = vunpack.c.l.b16 %v196
    %v268 = vunpack.c.h.b16 %v196
    %v269 = vunpack.c.l.b16 %v197
    %v270 = vunpack.c.h.b16 %v197
    %v271 = vunpack.c.l.b16 %v198
    %v272 = vunpack.c.h.b16 %v198
    %v273 = vunpack.c.l.b16 %v199
    %v274 = vunpack.c.h.b16 %v199
    %v275 = vunpack.c.l.b16 %v200
    %v276 = vunpack.c.h.b16 %v200
    %v277 = vunpack.c.l.b16 %v201
    %v278 = vunpack.c.h.b16 %v201
    %v279 = vunpack.c.l.b16 %v202
    %v280 = vunpack.c.h.b16 %v202
    %v281 = vunpack.c.l.b16 %v203
    %v282 = vunpack.c.h.b16 %v203
    %v283 = vunpack.c.l.b16 %v204
    %v284 = vunpack.c.h.b16 %v204
    %v285 = vunpack.c.l.b16 %v205
    %v286 = vunpack.c.h.b16 %v205
    %v287 = vunpack.c.l.b16 %v206
    %v288 = vunpack.c.h.b16 %v206
    %v289 = vunpack.c.l.b16 %v207
    %v290 = vunpack.c.h.b16 %v207
    %v291 = vunpack.c.l.b16 %v208
    %v292 = vunpack.c.h.b16 %v208
    %v293 = vunpack.c.l.b16 %v209
    %v294 = vunpack.c.h.b16 %v209
    %v295 = vunpack.c.l.b16 %v210
    %v296 = vunpack.c.h.b16 %v210
    %v297 = vunpack.c.l.b16 %v211
    %v298 = vunpack.c.h.b16 %v211
    %v299 = vunpack.c.l.b16 %v212
    %v300 = vunpack.c.h.b16 %v212
    %v301 = vunpack.c.l.b16 %v213
    %v302 = vunpack.c.h.b16 %v213
    %v303 = vunpack.c.l.b16 %v214
    %v304 = vunpack.c.h.b16 %v214
    %v305 = vunpack.c.l.b16 %v215
    %v306 = vunpack.c.h.b16 %v215
    %v307 = vunpack.c.l.b16 %v216
    %v308 = vunpack.c.h.b16 %v216
    %v309 = vunpack.c.l.b16 %v217
    %v310 = vunpack.c.h.b16 %v217
    %v311 = vunpack.c.l.b16 %v218
    %v312 = vunpack.c.h.b16 %v218
    %v313 = vunpack.c.l.b16 %v219
    %v314 = vunpack.c.h.b16 %v219
    %v315 = vunpack.c.l.b16 %v220
    %v316 = vunpack.c.h.b16 %v220
    %v317 = vunpack.c.l.b16 %v221
    %v318 = vunpack.c.h.b16 %v221
    %v319 = vunpack.c.l.b16 %v222
    %v320 = vunpack.c.h.b16 %v222
    %v321 = vunpack.c.l.b16 %v223
    %v322 = vunpack.c.h.b16 %v223
    %v323 = vunpack.c.l.b16 %v224
    %v324 = vunpack.c.h.b16 %v224
    %v325 = vunpack.c.l.b16 %v225
    %v326 = vunpack.c.h.b16 %v225
    %v327 = vunpack.c.l.b16 %v226
    %v328 = vunpack.c.h.b16 %v226
    %v329 = vunpack.c.l.b16 %v227
    %v330 = vunpack.c.h.b16 %v227
    %v331 = vpack.c.b16 %v269, %v267
    %v332 = vpack.c.b16 %v270, %v268
    %v333 = vpack.c.b16 %v273, %v271
    %v334 = vpack.c.b16 %v274, %v272
    %v335 = vpack.c.b16 %v277, %v275
    %v336 = vpack.c.b16 %v278, %v276
    %v337 = vpack.c.b16 %v281, %v279
    %v338 = vpack.c.b16 %v282, %v280
    %v339 = vpack.c.b16 %v285, %v283
    %v340 = vpack.c.b16 %v286, %v284
    %v341 = vpack.c.b16 %v289, %v287
    %v342 = vpack.c.b16 %v290, %v288
    %v343 = vpack.c.b16 %v293, %v291
    %v344 = vpack.c.b16 %v294, %v292
    %v345 = vpack.c.b16 %v297, %v295
    %v346 = vpack.c.b16 %v298, %v296
    %v347 = vpack.c.b16 %v301, %v299
    %v348 = vpack.c.b16 %v302, %v300
    %v349 = vpack.c.b16 %v305, %v303
    %v350 = vpack.c.b16 %v306, %v304
    %v351 = vpack.c.b16 %v309, %v307
    %v352 = vpack.c.b16 %v310, %v308
    %v353 = vpack.c.b16 %v313, %v311
    %v354 = vpack.c.b16 %v314, %v312
    %v355 = vpack.c.b16 %v317, %v315
    %v356 = vpack.c.b16 %v318, %v316
    %v357 = vpack.c.b16 %v321, %v319
    %v358 = vpack.c.b16 %v322, %v320
    %v359 = vpack.c.b16 %v325, %v323
    %v360 = vpack.c.b16 %v326, %v324
    %v361 = vpack.c.b16 %v329, %v327
    %v362 = vpack.c.b16 %v330, %v328
    %395 = vmatpush.bf16.msra.mxu0 %v345
    %396 = vmatpush.bf16.msra.mxu0 %v343
    %397 = vmatpush.bf16.msra.mxu0 %v341
    %398 = vmatpush.bf16.msra.mxu0 %v339
    %399 = vmatpush.bf16.msra.mxu0 %v337
    %400 = vmatpush.bf16.msra.mxu0 %v335
    %401 = vmatpush.bf16.msra.mxu0 %v333
    %402 = vmatpush.bf16.msra.mxu0 %v331
    %403 = vmatmul.bf16.gmra.mxu0 %v194
    %v404 = vpop.f32.mrf.mxu0
    %v405 = vadd.f32 %v231, %v404
    %v406 = vpop.f32.mrf.mxu0
    %407 = vdwg.mxu0
    %408 = vmatpush.bf16.msra.mxu0 %v361
    %409 = vmatpush.bf16.msra.mxu0 %v359
    %410 = vmatpush.bf16.msra.mxu0 %v357
    %411 = vmatpush.bf16.msra.mxu0 %v355
    %412 = vmatpush.bf16.msra.mxu0 %v353
    %413 = vmatpush.bf16.msra.mxu0 %v351
    %414 = vmatpush.bf16.msra.mxu0 %v349
    %415 = vmatpush.bf16.msra.mxu0 %v347
    %416 = vmatmul.bf16.gmra.mxu0 %v195
    %v417 = vpop.f32.mrf.mxu0
    %v418 = vadd.f32 %v405, %v417
    %v419 = vpop.f32.mrf.mxu0
    %420 = vdwg.mxu0
    %421 = vmatpush.bf16.msra.mxu0 %v346
    %422 = vmatpush.bf16.msra.mxu0 %v344
    %423 = vmatpush.bf16.msra.mxu0 %v342
    %424 = vmatpush.bf16.msra.mxu0 %v340
    %425 = vmatpush.bf16.msra.mxu0 %v338
    %426 = vmatpush.bf16.msra.mxu0 %v336
    %427 = vmatpush.bf16.msra.mxu0 %v334
    %428 = vmatpush.bf16.msra.mxu0 %v332
    %429 = vmatmul.bf16.gmra.mxu0 %v194
    %v430 = vpop.f32.mrf.mxu0
    %v431 = vadd.f32 %v232, %v430
    %v432 = vpop.f32.mrf.mxu0
    %433 = vdwg.mxu0
    %434 = vmatpush.bf16.msra.mxu0 %v362
    %435 = vmatpush.bf16.msra.mxu0 %v360
    %436 = vmatpush.bf16.msra.mxu0 %v358
    %437 = vmatpush.bf16.msra.mxu0 %v356
    %438 = vmatpush.bf16.msra.mxu0 %v354
    %439 = vmatpush.bf16.msra.mxu0 %v352
    %440 = vmatpush.bf16.msra.mxu0 %v350
    %441 = vmatpush.bf16.msra.mxu0 %v348
    %442 = vmatmul.bf16.gmra.mxu0 %v195
    %v443 = vpop.f32.mrf.mxu0
    %v444 = vadd.f32 %v431, %v443
    %v445 = vpop.f32.mrf.mxu0
    %446 = vdwg.mxu0
    %vm447 = vcmp.gt.f32.partialorder %v418, 0.0
    %vm448 = vcmp.gt.f32.partialorder %v444, 0.0
    %v449 = vmul.f32 %v418, 0.01
    %v450 = vmul.f32 %v444, 0.01
    %v451 = vsel %vm447, %v418, %v449
    %v452 = vsel %vm448, %v444, %v450
    %453 = vrot.lane.b32.xlu0 %v451, 127
    %v454 = vpop.permute.xlu0 %453
    %455 = vrot.lane.b32.xlu0 %v452, 127
    %v456 = vpop.permute.xlu0 %455
    %v457 = vsel %vm180, %v454, %v456
    %v458 = vsel %vm180, %v456, %v454
    %459 = vrot.lane.b32.xlu0 %v451, 126
    %v460 = vpop.permute.xlu0 %459
    %461 = vrot.lane.b32.xlu0 %v452, 126
    %v462 = vpop.permute.xlu0 %461
    %v463 = vsel %vm187, %v460, %v462
    %v464 = vsel %vm187, %v462, %v460
    %v465 = vmax.f32 %v451, %v457
    %v466 = vmax.f32 %v452, %v458
    %v467 = vmax.f32 %v465, %v463
    %v468 = vmax.f32 %v466, %v464
    %v469 = vpack.c.bf16 %v467, %v467
    %v470 = vpack.c.bf16 %v468, %v468
    %s471 = scalar_lea.vmem [#allocation7], 256
    %v472 = vld [vmem:[%s471] sm:$0xff]
    %v473 = vld [vmem:[%s471 + $0x8] sm:$0xff]
    %v474 = vld [vmem:[%s471 + $0x10] sm:$0xff]
    %v475 = vld [vmem:[%s471 + $0x18] sm:$0xff]
    %v476 = vld [vmem:[%s471 + $0x20] sm:$0xff]
    %v477 = vld [vmem:[%s471 + $0x28] sm:$0xff]
    %v478 = vld [vmem:[%s471 + $0x30] sm:$0xff]
    %v479 = vld [vmem:[%s471 + $0x38] sm:$0xff]
    %v480 = vld [vmem:[%s471 + $0x40] sm:$0xff]
    %v481 = vld [vmem:[%s471 + $0x48] sm:$0xff]
    %v482 = vld [vmem:[%s471 + $0x50] sm:$0xff]
    %v483 = vld [vmem:[%s471 + $0x58] sm:$0xff]
    %v484 = vld [vmem:[%s471 + $0x60] sm:$0xff]
    %v485 = vld [vmem:[%s471 + $0x68] sm:$0xff]
    %v486 = vld [vmem:[%s471 + $0x70] sm:$0xff]
    %v487 = vld [vmem:[%s471 + $0x78] sm:$0xff]
    %v488 = vld [vmem:[%s471 + $0x80] sm:$0xff]
    %v489 = vld [vmem:[%s471 + $0x88] sm:$0xff]
    %v490 = vld [vmem:[%s471 + $0x90] sm:$0xff]
    %v491 = vld [vmem:[%s471 + $0x98] sm:$0xff]
    %v492 = vld [vmem:[%s471 + $0xa0] sm:$0xff]
    %v493 = vld [vmem:[%s471 + $0xa8] sm:$0xff]
    %v494 = vld [vmem:[%s471 + $0xb0] sm:$0xff]
    %v495 = vld [vmem:[%s471 + $0xb8] sm:$0xff]
    %v496 = vld [vmem:[%s471 + $0xc0] sm:$0xff]
    %v497 = vld [vmem:[%s471 + $0xc8] sm:$0xff]
    %v498 = vld [vmem:[%s471 + $0xd0] sm:$0xff]
    %v499 = vld [vmem:[%s471 + $0xd8] sm:$0xff]
    %v500 = vld [vmem:[%s471 + $0xe0] sm:$0xff]
    %v501 = vld [vmem:[%s471 + $0xe8] sm:$0xff]
    %v502 = vld [vmem:[%s471 + $0xf0] sm:$0xff]
    %v503 = vld [vmem:[%s471 + $0xf8] sm:$0xff]
    %s504 = scalar_lea.vmem [#allocation11], 2
    %v505 = vld [vmem:[%s504] ss:$4 sm:$0x3]
    %v507 = vperm.slane %v505, 0
    %v508 = vperm.slane %v505, 1
    %v543 = vunpack.c.l.b16 %v472
    %v544 = vunpack.c.h.b16 %v472
    %v545 = vunpack.c.l.b16 %v473
    %v546 = vunpack.c.h.b16 %v473
    %v547 = vunpack.c.l.b16 %v474
    %v548 = vunpack.c.h.b16 %v474
    %v549 = vunpack.c.l.b16 %v475
    %v550 = vunpack.c.h.b16 %v475
    %v551 = vunpack.c.l.b16 %v476
    %v552 = vunpack.c.h.b16 %v476
    %v553 = vunpack.c.l.b16 %v477
    %v554 = vunpack.c.h.b16 %v477
    %v555 = vunpack.c.l.b16 %v478
    %v556 = vunpack.c.h.b16 %v478
    %v557 = vunpack.c.l.b16 %v479
    %v558 = vunpack.c.h.b16 %v479
    %v559 = vunpack.c.l.b16 %v480
    %v560 = vunpack.c.h.b16 %v480
    %v561 = vunpack.c.l.b16 %v481
    %v562 = vunpack.c.h.b16 %v481
    %v563 = vunpack.c.l.b16 %v482
    %v564 = vunpack.c.h.b16 %v482
    %v565 = vunpack.c.l.b16 %v483
    %v566 = vunpack.c.h.b16 %v483
    %v567 = vunpack.c.l.b16 %v484
    %v568 = vunpack.c.h.b16 %v484
    %v569 = vunpack.c.l.b16 %v485
    %v570 = vunpack.c.h.b16 %v485
    %v571 = vunpack.c.l.b16 %v486
    %v572 = vunpack.c.h.b16 %v486
    %v573 = vunpack.c.l.b16 %v487
    %v574 = vunpack.c.h.b16 %v487
    %v575 = vunpack.c.l.b16 %v488
    %v576 = vunpack.c.h.b16 %v488
    %v577 = vunpack.c.l.b16 %v489
    %v578 = vunpack.c.h.b16 %v489
    %v579 = vunpack.c.l.b16 %v490
    %v580 = vunpack.c.h.b16 %v490
    %v581 = vunpack.c.l.b16 %v491
    %v582 = vunpack.c.h.b16 %v491
    %v583 = vunpack.c.l.b16 %v492
    %v584 = vunpack.c.h.b16 %v492
    %v585 = vunpack.c.l.b16 %v493
    %v586 = vunpack.c.h.b16 %v493
    %v587 = vunpack.c.l.b16 %v494
    %v588 = vunpack.c.h.b16 %v494
    %v589 = vunpack.c.l.b16 %v495
    %v590 = vunpack.c.h.b16 %v495
    %v591 = vunpack.c.l.b16 %v496
    %v592 = vunpack.c.h.b16 %v496
    %v593 = vunpack.c.l.b16 %v497
    %v594 = vunpack.c.h.b16 %v497
    %v595 = vunpack.c.l.b16 %v498
    %v596 = vunpack.c.h.b16 %v498
    %v597 = vunpack.c.l.b16 %v499
    %v598 = vunpack.c.h.b16 %v499
    %v599 = vunpack.c.l.b16 %v500
    %v600 = vunpack.c.h.b16 %v500
    %v601 = vunpack.c.l.b16 %v501
    %v602 = vunpack.c.h.b16 %v501
    %v603 = vunpack.c.l.b16 %v502
    %v604 = vunpack.c.h.b16 %v502
    %v605 = vunpack.c.l.b16 %v503
    %v606 = vunpack.c.h.b16 %v503
    %v607 = vpack.c.b16 %v545, %v543
    %v608 = vpack.c.b16 %v546, %v544
    %v609 = vpack.c.b16 %v549, %v547
    %v610 = vpack.c.b16 %v550, %v548
    %v611 = vpack.c.b16 %v553, %v551
    %v612 = vpack.c.b16 %v554, %v552
    %v613 = vpack.c.b16 %v557, %v555
    %v614 = vpack.c.b16 %v558, %v556
    %v615 = vpack.c.b16 %v561, %v559
    %v616 = vpack.c.b16 %v562, %v560
    %v617 = vpack.c.b16 %v565, %v563
    %v618 = vpack.c.b16 %v566, %v564
    %v619 = vpack.c.b16 %v569, %v567
    %v620 = vpack.c.b16 %v570, %v568
    %v621 = vpack.c.b16 %v573, %v571
    %v622 = vpack.c.b16 %v574, %v572
    %v623 = vpack.c.b16 %v577, %v575
    %v624 = vpack.c.b16 %v578, %v576
    %v625 = vpack.c.b16 %v581, %v579
    %v626 = vpack.c.b16 %v582, %v580
    %v627 = vpack.c.b16 %v585, %v583
    %v628 = vpack.c.b16 %v586, %v584
    %v629 = vpack.c.b16 %v589, %v587
    %v630 = vpack.c.b16 %v590, %v588
    %v631 = vpack.c.b16 %v593, %v591
    %v632 = vpack.c.b16 %v594, %v592
    %v633 = vpack.c.b16 %v597, %v595
    %v634 = vpack.c.b16 %v598, %v596
    %v635 = vpack.c.b16 %v601, %v599
    %v636 = vpack.c.b16 %v602, %v600
    %v637 = vpack.c.b16 %v605, %v603
    %v638 = vpack.c.b16 %v606, %v604
    %671 = vmatpush.bf16.msra.mxu0 %v621
    %672 = vmatpush.bf16.msra.mxu0 %v619
    %673 = vmatpush.bf16.msra.mxu0 %v617
    %674 = vmatpush.bf16.msra.mxu0 %v615
    %675 = vmatpush.bf16.msra.mxu0 %v613
    %676 = vmatpush.bf16.msra.mxu0 %v611
    %677 = vmatpush.bf16.msra.mxu0 %v609
    %678 = vmatpush.bf16.msra.mxu0 %v607
    %679 = vmatmul.bf16.gmra.mxu0 %v469
    %v680 = vpop.f32.mrf.mxu0
    %v681 = vadd.f32 %v507, %v680
    %v682 = vpop.f32.mrf.mxu0
    %683 = vdwg.mxu0
    %684 = vmatpush.bf16.msra.mxu0 %v637
    %685 = vmatpush.bf16.msra.mxu0 %v635
    %686 = vmatpush.bf16.msra.mxu0 %v633
    %687 = vmatpush.bf16.msra.mxu0 %v631
    %688 = vmatpush.bf16.msra.mxu0 %v629
    %689 = vmatpush.bf16.msra.mxu0 %v627
    %690 = vmatpush.bf16.msra.mxu0 %v625
    %691 = vmatpush.bf16.msra.mxu0 %v623
    %692 = vmatmul.bf16.gmra.mxu0 %v470
    %v693 = vpop.f32.mrf.mxu0
    %v694 = vadd.f32 %v681, %v693
    %v695 = vpop.f32.mrf.mxu0
    %696 = vdwg.mxu0
    %697 = vmatpush.bf16.msra.mxu0 %v622
    %698 = vmatpush.bf16.msra.mxu0 %v620
    %699 = vmatpush.bf16.msra.mxu0 %v618
    %700 = vmatpush.bf16.msra.mxu0 %v616
    %701 = vmatpush.bf16.msra.mxu0 %v614
    %702 = vmatpush.bf16.msra.mxu0 %v612
    %703 = vmatpush.bf16.msra.mxu0 %v610
    %704 = vmatpush.bf16.msra.mxu0 %v608
    %705 = vmatmul.bf16.gmra.mxu0 %v469
    %v706 = vpop.f32.mrf.mxu0
    %v707 = vadd.f32 %v508, %v706
    %v708 = vpop.f32.mrf.mxu0
    %709 = vdwg.mxu0
    %710 = vmatpush.bf16.msra.mxu0 %v638
    %711 = vmatpush.bf16.msra.mxu0 %v636
    %712 = vmatpush.bf16.msra.mxu0 %v634
    %713 = vmatpush.bf16.msra.mxu0 %v632
    %714 = vmatpush.bf16.msra.mxu0 %v630
    %715 = vmatpush.bf16.msra.mxu0 %v628
    %716 = vmatpush.bf16.msra.mxu0 %v626
    %717 = vmatpush.bf16.msra.mxu0 %v624
    %718 = vmatmul.bf16.gmra.mxu0 %v470
    %v719 = vpop.f32.mrf.mxu0
    %v720 = vadd.f32 %v707, %v719
    %v721 = vpop.f32.mrf.mxu0
    %722 = vdwg.mxu0
    %vm723 = vcmp.gt.f32.partialorder %v694, 0.0
    %vm724 = vcmp.gt.f32.partialorder %v720, 0.0
    %v725 = vmul.f32 %v694, 0.01
    %v726 = vmul.f32 %v720, 0.01
    %v727 = vsel %vm723, %v694, %v725
    %v728 = vsel %vm724, %v720, %v726
    %v729 = vpack.c.bf16 %v727, %v727
    %v730 = vpack.c.bf16 %v728, %v728
    %v731 = vld [vmem:[#allocation8] sm:$0xf]
    %v732 = vld [vmem:[#allocation8 + $0x4] sm:$0xf]
    %v733 = vld [vmem:[#allocation8 + $0x8] sm:$0xf]
    %v734 = vld [vmem:[#allocation8 + $0xc] sm:$0xf]
    %v735 = vld [vmem:[#allocation8 + $0x10] sm:$0xf]
    %v736 = vld [vmem:[#allocation8 + $0x14] sm:$0xf]
    %v737 = vld [vmem:[#allocation8 + $0x18] sm:$0xf]
    %v738 = vld [vmem:[#allocation8 + $0x1c] sm:$0xf]
    %v739 = vld [vmem:[#allocation8 + $0x20] sm:$0xf]
    %v740 = vld [vmem:[#allocation8 + $0x24] sm:$0xf]
    %v741 = vld [vmem:[#allocation8 + $0x28] sm:$0xf]
    %v742 = vld [vmem:[#allocation8 + $0x2c] sm:$0xf]
    %v743 = vld [vmem:[#allocation8 + $0x30] sm:$0xf]
    %v744 = vld [vmem:[#allocation8 + $0x34] sm:$0xf]
    %v745 = vld [vmem:[#allocation8 + $0x38] sm:$0xf]
    %v746 = vld [vmem:[#allocation8 + $0x3c] sm:$0xf]
    %v747 = vld [vmem:[#allocation8 + $0x40] sm:$0xf]
    %v748 = vld [vmem:[#allocation8 + $0x44] sm:$0xf]
    %v749 = vld [vmem:[#allocation8 + $0x48] sm:$0xf]
    %v750 = vld [vmem:[#allocation8 + $0x4c] sm:$0xf]
    %v751 = vld [vmem:[#allocation8 + $0x50] sm:$0xf]
    %v752 = vld [vmem:[#allocation8 + $0x54] sm:$0xf]
    %v753 = vld [vmem:[#allocation8 + $0x58] sm:$0xf]
    %v754 = vld [vmem:[#allocation8 + $0x5c] sm:$0xf]
    %v755 = vld [vmem:[#allocation8 + $0x60] sm:$0xf]
    %v756 = vld [vmem:[#allocation8 + $0x64] sm:$0xf]
    %v757 = vld [vmem:[#allocation8 + $0x68] sm:$0xf]
    %v758 = vld [vmem:[#allocation8 + $0x6c] sm:$0xf]
    %v759 = vld [vmem:[#allocation8 + $0x70] sm:$0xf]
    %v760 = vld [vmem:[#allocation8 + $0x74] sm:$0xf]
    %v761 = vld [vmem:[#allocation8 + $0x78] sm:$0xf]
    %v762 = vld [vmem:[#allocation8 + $0x7c] sm:$0xf]
    %v763 = vld [vmem:[%s6] sm:$0x1]
    %v764 = vperm.slane %v763, 0
    %v797 = vunpack.c.l.b16 %v731
    %v798 = vunpack.c.l.b16 %v732
    %v799 = vunpack.c.l.b16 %v733
    %v800 = vunpack.c.l.b16 %v734
    %v801 = vunpack.c.l.b16 %v735
    %v802 = vunpack.c.l.b16 %v736
    %v803 = vunpack.c.l.b16 %v737
    %v804 = vunpack.c.l.b16 %v738
    %v805 = vunpack.c.l.b16 %v739
    %v806 = vunpack.c.l.b16 %v740
    %v807 = vunpack.c.l.b16 %v741
    %v808 = vunpack.c.l.b16 %v742
    %v809 = vunpack.c.l.b16 %v743
    %v810 = vunpack.c.l.b16 %v744
    %v811 = vunpack.c.l.b16 %v745
    %v812 = vunpack.c.l.b16 %v746
    %v813 = vunpack.c.l.b16 %v747
    %v814 = vunpack.c.l.b16 %v748
    %v815 = vunpack.c.l.b16 %v749
    %v816 = vunpack.c.l.b16 %v750
    %v817 = vunpack.c.l.b16 %v751
    %v818 = vunpack.c.l.b16 %v752
    %v819 = vunpack.c.l.b16 %v753
    %v820 = vunpack.c.l.b16 %v754
    %v821 = vunpack.c.l.b16 %v755
    %v822 = vunpack.c.l.b16 %v756
    %v823 = vunpack.c.l.b16 %v757
    %v824 = vunpack.c.l.b16 %v758
    %v825 = vunpack.c.l.b16 %v759
    %v826 = vunpack.c.l.b16 %v760
    %v827 = vunpack.c.l.b16 %v761
    %v828 = vunpack.c.l.b16 %v762
    %v829 = vpack.c.b16 %v798, %v797
    %v830 = vpack.c.b16 %v800, %v799
    %v831 = vpack.c.b16 %v802, %v801
    %v832 = vpack.c.b16 %v804, %v803
    %v833 = vpack.c.b16 %v806, %v805
    %v834 = vpack.c.b16 %v808, %v807
    %v835 = vpack.c.b16 %v810, %v809
    %v836 = vpack.c.b16 %v812, %v811
    %v837 = vpack.c.b16 %v814, %v813
    %v838 = vpack.c.b16 %v816, %v815
    %v839 = vpack.c.b16 %v818, %v817
    %v840 = vpack.c.b16 %v820, %v819
    %v841 = vpack.c.b16 %v822, %v821
    %v842 = vpack.c.b16 %v824, %v823
    %v843 = vpack.c.b16 %v826, %v825
    %v844 = vpack.c.b16 %v828, %v827
    %861 = vmatpush.bf16.msra.mxu0 %v836
    %862 = vmatpush.bf16.msra.mxu0 %v835
    %863 = vmatpush.bf16.msra.mxu0 %v834
    %864 = vmatpush.bf16.msra.mxu0 %v833
    %865 = vmatpush.bf16.msra.mxu0 %v832
    %866 = vmatpush.bf16.msra.mxu0 %v831
    %867 = vmatpush.bf16.msra.mxu0 %v830
    %868 = vmatpush.bf16.msra.mxu0 %v829
    %869 = vmatmul.bf16.gmra.mxu0 %v729
    %v870 = vpop.f32.mrf.mxu0
    %v871 = vadd.f32 %v764, %v870
    %v872 = vpop.f32.mrf.mxu0
    %873 = vdwg.mxu0
    %874 = vmatpush.bf16.msra.mxu0 %v844
    %875 = vmatpush.bf16.msra.mxu0 %v843
    %876 = vmatpush.bf16.msra.mxu0 %v842
    %877 = vmatpush.bf16.msra.mxu0 %v841
    %878 = vmatpush.bf16.msra.mxu0 %v840
    %879 = vmatpush.bf16.msra.mxu0 %v839
    %880 = vmatpush.bf16.msra.mxu0 %v838
    %881 = vmatpush.bf16.msra.mxu0 %v837
    %882 = vmatmul.bf16.gmra.mxu0 %v730
    %v883 = vpop.f32.mrf.mxu0
    %v884 = vadd.f32 %v871, %v883
    %v885 = vpop.f32.mrf.mxu0
    %886 = vdwg.mxu0
    %vm887 = vcmp.gt.f32.partialorder %v884, 0.0
    %v888 = vmul.f32 %v884, 0.01
    %v889 = vsel %vm887, %v884, %v888
    %v890 = vpack.c.bf16 %v889, %v889
    %v891 = vld [vmem:[#allocation10] sm:$0xf]
    %v892 = vld [vmem:[#allocation10 + $0x4] sm:$0xf]
    %v893 = vld [vmem:[#allocation10 + $0x8] sm:$0xf]
    %v894 = vld [vmem:[#allocation10 + $0xc] sm:$0xf]
    %v895 = vld [vmem:[#allocation10 + $0x10] sm:$0xf]
    %v896 = vld [vmem:[#allocation10 + $0x14] sm:$0xf]
    %v897 = vld [vmem:[#allocation10 + $0x18] sm:$0xf]
    %v898 = vld [vmem:[#allocation10 + $0x1c] sm:$0xf]
    %v899 = vld [vmem:[#allocation10 + $0x20] sm:$0xf]
    %v900 = vld [vmem:[#allocation10 + $0x24] sm:$0xf]
    %v901 = vld [vmem:[#allocation10 + $0x28] sm:$0xf]
    %v902 = vld [vmem:[#allocation10 + $0x2c] sm:$0xf]
    %v903 = vld [vmem:[#allocation10 + $0x30] sm:$0xf]
    %v904 = vld [vmem:[#allocation10 + $0x34] sm:$0xf]
    %v905 = vld [vmem:[#allocation10 + $0x38] sm:$0xf]
    %v906 = vld [vmem:[#allocation10 + $0x3c] sm:$0xf]
    %v907 = vld [vmem:[%s6 + $0x1] sm:$0x1]
    %v908 = vperm.slane %v907, 0
    %v925 = vunpack.c.l.b16 %v891
    %v926 = vunpack.c.l.b16 %v892
    %v927 = vunpack.c.l.b16 %v893
    %v928 = vunpack.c.l.b16 %v894
    %v929 = vunpack.c.l.b16 %v895
    %v930 = vunpack.c.l.b16 %v896
    %v931 = vunpack.c.l.b16 %v897
    %v932 = vunpack.c.l.b16 %v898
    %v933 = vunpack.c.l.b16 %v899
    %v934 = vunpack.c.l.b16 %v900
    %v935 = vunpack.c.l.b16 %v901
    %v936 = vunpack.c.l.b16 %v902
    %v937 = vunpack.c.l.b16 %v903
    %v938 = vunpack.c.l.b16 %v904
    %v939 = vunpack.c.l.b16 %v905
    %v940 = vunpack.c.l.b16 %v906
    %v941 = vpack.c.b16 %v926, %v925
    %v942 = vpack.c.b16 %v928, %v927
    %v943 = vpack.c.b16 %v930, %v929
    %v944 = vpack.c.b16 %v932, %v931
    %v945 = vpack.c.b16 %v934, %v933
    %v946 = vpack.c.b16 %v936, %v935
    %v947 = vpack.c.b16 %v938, %v937
    %v948 = vpack.c.b16 %v940, %v939
    %957 = vmatpush.bf16.msra.mxu0 %v948
    %958 = vmatpush.bf16.msra.mxu0 %v947
    %959 = vmatpush.bf16.msra.mxu0 %v946
    %960 = vmatpush.bf16.msra.mxu0 %v945
    %961 = vmatpush.bf16.msra.mxu0 %v944
    %962 = vmatpush.bf16.msra.mxu0 %v943
    %963 = vmatpush.bf16.msra.mxu0 %v942
    %964 = vmatpush.bf16.msra.mxu0 %v941
    %965 = vmatmul.bf16.gmra.mxu0 %v890
    %v966 = vpop.f32.mrf.mxu0
    %v967 = vadd.f32 %v908, %v966
    %v968 = vpop.f32.mrf.mxu0
    %969 = vdwg.mxu0
    %vm970 = vcmp.gt.f32.partialorder %v967, 0.0
    %v971 = vmul.f32 %v967, 0.01
    %v972 = vsel %vm970, %v967, %v971
    %v973 = vpack.c.bf16 %v972, %v972
    %s974 = scalar_lea.vmem [#allocation10], 64
    %v975 = vld [vmem:[%s974] sm:$0xf]
    %v976 = vld [vmem:[%s974 + $0x4] sm:$0xf]
    %v977 = vld [vmem:[%s974 + $0x8] sm:$0xf]
    %v978 = vld [vmem:[%s974 + $0xc] sm:$0xf]
    %v979 = vld [vmem:[%s974 + $0x10] sm:$0xf]
    %v980 = vld [vmem:[%s974 + $0x14] sm:$0xf]
    %v981 = vld [vmem:[%s974 + $0x18] sm:$0xf]
    %v982 = vld [vmem:[%s974 + $0x1c] sm:$0xf]
    %v983 = vld [vmem:[%s974 + $0x20] sm:$0xf]
    %v984 = vld [vmem:[%s974 + $0x24] sm:$0xf]
    %v985 = vld [vmem:[%s974 + $0x28] sm:$0xf]
    %v986 = vld [vmem:[%s974 + $0x2c] sm:$0xf]
    %v987 = vld [vmem:[%s974 + $0x30] sm:$0xf]
    %v988 = vld [vmem:[%s974 + $0x34] sm:$0xf]
    %v989 = vld [vmem:[%s974 + $0x38] sm:$0xf]
    %v990 = vld [vmem:[%s974 + $0x3c] sm:$0xf]
    %v991 = vld [vmem:[%s6 + $0x2] sm:$0x1]
    %v992 = vperm.slane %v991, 0
    %v1009 = vunpack.c.l.b16 %v975
    %v1010 = vunpack.c.l.b16 %v976
    %v1011 = vunpack.c.l.b16 %v977
    %v1012 = vunpack.c.l.b16 %v978
    %v1013 = vunpack.c.l.b16 %v979
    %v1014 = vunpack.c.l.b16 %v980
    %v1015 = vunpack.c.l.b16 %v981
    %v1016 = vunpack.c.l.b16 %v982
    %v1017 = vunpack.c.l.b16 %v983
    %v1018 = vunpack.c.l.b16 %v984
    %v1019 = vunpack.c.l.b16 %v985
    %v1020 = vunpack.c.l.b16 %v986
    %v1021 = vunpack.c.l.b16 %v987
    %v1022 = vunpack.c.l.b16 %v988
    %v1023 = vunpack.c.l.b16 %v989
    %v1024 = vunpack.c.l.b16 %v990
    %v1025 = vpack.c.b16 %v1010, %v1009
    %v1026 = vpack.c.b16 %v1012, %v1011
    %v1027 = vpack.c.b16 %v1014, %v1013
    %v1028 = vpack.c.b16 %v1016, %v1015
    %v1029 = vpack.c.b16 %v1018, %v1017
    %v1030 = vpack.c.b16 %v1020, %v1019
    %v1031 = vpack.c.b16 %v1022, %v1021
    %v1032 = vpack.c.b16 %v1024, %v1023
    %1041 = vmatpush.bf16.msra.mxu0 %v1032
    %1042 = vmatpush.bf16.msra.mxu0 %v1031
    %1043 = vmatpush.bf16.msra.mxu0 %v1030
    %1044 = vmatpush.bf16.msra.mxu0 %v1029
    %1045 = vmatpush.bf16.msra.mxu0 %v1028
    %1046 = vmatpush.bf16.msra.mxu0 %v1027
    %1047 = vmatpush.bf16.msra.mxu0 %v1026
    %1048 = vmatpush.bf16.msra.mxu0 %v1025
    %1049 = vmatmul.bf16.gmra.mxu0 %v973
    %v1050 = vpop.f32.mrf.mxu0
    %v1051 = vadd.f32 %v992, %v1050
    %v1052 = vpop.f32.mrf.mxu0
    %1053 = vdwg.mxu0
    %1054 = vst [vmem:[#allocation13] sm:$0xff] %v1051
    // Predicated region
    $region54: #{tpu_custom_call.1} parent=1 // pred_check
      _
    $region55: #{tpu_custom_call.1} parent=1 // pred_check_branch
      %1056 = sbr.rel (0) target = $region57
    $region56: #{tpu_custom_call.1} parent=1 // pred_region
      %1058 = vsyncadd [#allocation4], 0
      %s1060 = sshll.u32 [#allocation13], 4
      %s1061 = int_to_ptr.vmem [resolvable:$true] %s1060
      %s1062 = sshll.u32 %s7, 4
      %s1063 = int_to_ptr.hbm [resolvable:$true] %s1062
      %1065 = dma.vmem_to_hbm [thread:$0]  %s1061, 128, %s1063, [#allocation4]
    $region57: #{tpu_custom_call.1} parent=1 // pred_fallthru
      _
    // Predicated region
    $region58: #{tpu_custom_call.1} parent=1 // pred_check
      _
    $region59: #{tpu_custom_call.1} parent=1 // pred_check_branch
      %1067 = sbr.rel (0) target = $region61
    $region60: #{tpu_custom_call.1} parent=1 // pred_region
      %1069 = dma.done [#allocation4], 128
    $region61: #{tpu_custom_call.1} parent=1 // pred_fallthru
      _
    %1070 = vsyncpa [#allocation3], 1
    %1071 = vsyncpa [#allocation6], 1
    %1072 = vsyncpa [#allocation9], 1
    %1073 = vsyncpa [#allocation12], 1
    %1074 = vsyncpa [#allocation4], 1

</llo_original>
